<compile_context>
chip_gen: v7x
topology: tpu7x:2x2x1
jax: 0.10.0
libtpu: 0.0.40
codegen_flags: <defaults>
</compile_context>

<pallas_src>
import math

import jax
import jax.numpy as jnp
from jax.experimental import pallas as pl
from jax.experimental.pallas import tpu as pltpu

_LANE = 128
_SUBLANE = 8


def _round_up(v, m):
    return (v + m - 1) // m * m


def _vmem_capacity_bytes():
    try:
        cap = getattr(pltpu.get_tpu_info(), "vmem_capacity_bytes", None)
        if cap:
            return int(cap)
    except Exception:
        pass
    return 64 << 20  # conservative (v7x-sized) fallback


def supertree_kernel(x_ref, w1_ref, b1_ref, w2_ref, b2_ref, o_ref):
    # Hidden layer: (tb, in) @ (in, hid) on the MXU with f32 accumulation,
    # + bias, ReLU (bias/ReLU in f32 -> v5e's lack of bf16 VPU is irrelevant).
    x = x_ref[...].astype(w1_ref.dtype)
    h = jnp.dot(x, w1_ref[...], preferred_element_type=jnp.float32)
    h = jnp.maximum(h + b1_ref[...], 0.0)
    # Output layer: (tb, hid) @ (hid, out) + bias.
    y = jnp.dot(h.astype(w2_ref.dtype), w2_ref[...],
                preferred_element_type=jnp.float32)
    y = y + b2_ref[...]
    # Fold k consecutive batch rows into the 128-lane axis so the store is
    # lane-dense (no-op when the out block is (tb, out_dim)).
    o_ref[...] = y.reshape(o_ref.shape).astype(o_ref.dtype)


def prepare_supertree_params(w1, b1, w2, b2, *, compute_dtype=jnp.bfloat16):
    """One-time parameter transform (hoisted out of the per-call path).

    PyTorch nn.Linear layout: w1 (hidden, input), b1 (hidden,),
    w2 (output, hidden), b2 (output,).  Weights are transposed to matmul
    layout and cast to compute_dtype (bf16 MXU fast path by default);
    biases stay f32 (added after the f32 accumulation).
    """
    w1_t = jnp.asarray(w1).T.astype(compute_dtype)
    w2_t = jnp.asarray(w2).T.astype(compute_dtype)
    b1_r = jnp.asarray(b1, jnp.float32).reshape(1, -1)
    b2_r = jnp.asarray(b2, jnp.float32).reshape(1, -1)
    return w1_t, b1_r, w2_t, b2_r


def supertree_forward_prepared(x, params, *, tb_target=1024, out_dtype=None):
    """Fused y = ReLU(x @ W1 + b1) @ W2 + b2 on pre-transformed params."""
    w1_t, b1_r, w2_t, b2_r = params
    B, in_dim = x.shape
    hid = w1_t.shape[1]
    out_dim = w2_t.shape[1]
    out_dtype = x.dtype if out_dtype is None else jnp.dtype(out_dtype)

    # Lane-packing factor: fold k batch rows into lanes so k*out_dim % 128 == 0.
    k = _LANE // math.gcd(out_dim, _LANE)
    if _SUBLANE * k > max(tb_target, _round_up(B, _SUBLANE)):
        k = 1  # very awkward out_dim with a tiny batch: skip packing

    # Batch tile: multiple of 8*k (x sublane-aligned and packed-out sublane-
    # aligned), as large as tb_target allows.  K (= in_dim) stays narrow.
    tile_unit = _SUBLANE * k
    tb = min(_round_up(tb_target, tile_unit), _round_up(B, tile_unit))
    # Prefer >= 2 grid steps when the batch allows (v7x: 2 TensorCores share
    # the "parallel" batch axis; also gives the pipeline work to overlap).
    if B >= 2 * tile_unit and pl.cdiv(B, tb) < 2:
        tb = _round_up(pl.cdiv(B, 2), tile_unit)
    grid = pl.cdiv(B, tb)  # ragged last tile handled by Pallas block masking

    in_item = jnp.dtype(x.dtype).itemsize
    w_item = jnp.dtype(w1_t.dtype).itemsize
    out_item = jnp.dtype(out_dtype).itemsize
    flops = 2 * B * (in_dim * hid + hid * out_dim)

    def run(kk):
        packed_cols = kk * out_dim
        out_rows = grid * (tb // kk)  # allocated packed rows (>= ceil(B/kk))

        bytes_accessed = int(
            B * in_dim * in_item
            + (w1_t.size + w2_t.size) * w_item
            + (b1_r.size + b2_r.size) * 4
            + out_rows * packed_cols * out_item)

        small_tile = tb <= 256 and grid >= 3
        n_x_buf = 3 if small_tile else 2
        vmem_needed = (
            (w1_t.size + w2_t.size) * w_item            # resident weights
            + (b1_r.size + b2_r.size) * 4               # resident biases
            + n_x_buf * tb * in_dim * in_item           # x tile buffers
            + 2 * (tb // kk) * packed_cols * out_item   # out tile buffers
            + tb * hid * 4 + tb * out_dim * 4)          # f32 h and y intermediates
        vmem_limit = int(min(max(2 * vmem_needed, 16 << 20),
                             int(0.85 * _vmem_capacity_bytes())))

        x_kwargs = {"pipeline_mode": pl.Buffered(3)} if small_tile else {}

        out_packed = pl.pallas_call(
            supertree_kernel,
            out_shape=jax.ShapeDtypeStruct((out_rows, packed_cols), out_dtype),
            grid_spec=pltpu.PrefetchScalarGridSpec(
                num_scalar_prefetch=0,
                grid=(grid,),
                in_specs=[
                    # x tile varies with the grid -> pipelined.
                    pl.BlockSpec((tb, in_dim), lambda i: (i, 0), **x_kwargs),
                    # Grid-invariant weights / biases: single-buffered residents.
                    pl.BlockSpec((in_dim, hid), lambda i: (0, 0),
                                 pipeline_mode=pl.Buffered(1)),
                    pl.BlockSpec((1, hid), lambda i: (0, 0),
                                 pipeline_mode=pl.Buffered(1)),
                    pl.BlockSpec((hid, out_dim), lambda i: (0, 0),
                                 pipeline_mode=pl.Buffered(1)),
                    pl.BlockSpec((1, out_dim), lambda i: (0, 0),
                                 pipeline_mode=pl.Buffered(1)),
                ],
                out_specs=pl.BlockSpec((tb // kk, packed_cols), lambda i: (i, 0)),
            ),
            compiler_params=pltpu.CompilerParams(
                dimension_semantics=("parallel",),
                vmem_limit_bytes=vmem_limit,
            ),
            cost_estimate=pl.CostEstimate(
                flops=flops, transcendentals=0, bytes_accessed=bytes_accessed),
        )(x, w1_t, b1_r, w2_t, b2_r)

        # Free contiguous view back to (rows, out_dim); drop rows >= B
        # (padded/garbage rows from the ragged last tile live only there).
        return out_packed.reshape(out_rows * kk, out_dim)[:B]

    if k == 1:
        return run(1)
    try:
        return run(k)
    except Exception:
        # Mosaic on this version could not lower the (tb, out_dim) ->
        # (tb//k, k*out_dim) in-kernel relayout: fall back to direct narrow
        # stores (identical HBM bytes, only the lane-dense-vst micro-win lost).
        return run(1)


def supertree_forward(x, w1, b1, w2, b2, *, compute_dtype=jnp.bfloat16, **kwargs):
    """Convenience wrapper; prefer prepare_supertree_params + *_prepared to
    avoid re-transposing the weights on every call."""
    params = prepare_supertree_params(w1, b1, w2, b2, compute_dtype=compute_dtype)
    return supertree_forward_prepared(x, params, **kwargs)


if __name__ == "__main__":
    # Small, module-consistent shapes.
    # TODO(synk): self.sigm (nn.Sigmoid) is defined but unused in forward(); omitted.
    batch, input_dim, hidden_dim, output_dim = 16, 32, 64, 16

    key = jax.random.PRNGKey(0)
    kx, kw1, kb1, kw2, kb2 = jax.random.split(key, 5)

    x = jax.random.normal(kx, (batch, input_dim), dtype=jnp.float32)

    # PyTorch nn.Linear-style uniform init bounds.
    bound1 = 1.0 / (input_dim ** 0.5)
    w1 = jax.random.uniform(kw1, (hidden_dim, input_dim), jnp.float32, -bound1, bound1)
    b1 = jax.random.uniform(kb1, (hidden_dim,), jnp.float32, -bound1, bound1)
    bound2 = 1.0 / (hidden_dim ** 0.5)
    w2 = jax.random.uniform(kw2, (output_dim, hidden_dim), jnp.float32, -bound2, bound2)
    b2 = jax.random.uniform(kb2, (output_dim,), jnp.float32, -bound2, bound2)

    # Pure-JAX reference of the same forward pass.
    ref = jnp.maximum(x @ w1.T + b1, 0.0) @ w2.T + b2

    # f32 path (tight tolerance); params prepared once and reused.
    params_f32 = prepare_supertree_params(w1, b1, w2, b2, compute_dtype=jnp.float32)
    out = jax.block_until_ready(supertree_forward_prepared(x, params_f32))
    assert out.shape == (batch, output_dim)
    assert jnp.allclose(out, ref, atol=1e-5, rtol=1e-5), "f32 mismatch vs reference"

    # Ragged batch (exercises in-kernel handling of the partial last tile;
    # no wrapper-side x padding copy).
    out_ragged = jax.block_until_ready(supertree_forward_prepared(x[:13], params_f32))
    assert out_ragged.shape == (13, output_dim)
    assert jnp.allclose(out_ragged, ref[:13], atol=1e-5, rtol=1e-5), "ragged mismatch"

    # Default bf16-weight MXU fast path (f32 accumulation), looser tolerance.
    out_bf16 = jax.block_until_ready(supertree_forward(x, w1, b1, w2, b2))
    assert out_bf16.shape == (batch, output_dim)
    assert jnp.allclose(out_bf16, ref, atol=5e-2, rtol=5e-2), "bf16 mismatch vs reference"

    print("KERNEL_OK")
</pallas_src>

<mosaic_0001>
module attributes {stable_mosaic.version = 11 : i64} {
  func.func @supertree_kernel(%arg0: i32, %arg1: memref<64x32xf32, #tpu.memory_space<vmem>>, %arg2: memref<32x64xf32, #tpu.memory_space<vmem>>, %arg3: memref<1x64xf32, #tpu.memory_space<vmem>>, %arg4: memref<64x16xf32, #tpu.memory_space<vmem>>, %arg5: memref<1x16xf32, #tpu.memory_space<vmem>>, %arg6: memref<8x128xf32, #tpu.memory_space<vmem>>) attributes {dimension_semantics = [#tpu.dimension_semantics<parallel>], iteration_bounds = array<i64: 1>, scalar_prefetch = 0 : i64, scratch_operands = 0 : i64, tpu.core_type = #tpu.core_type<tc>, window_params = [{transform_indices = @transform_0, window_bounds = array<i64: 64, 32>}, {pipeline_mode = #tpu.pipeline_mode<synchronous>, transform_indices = @transform_1, window_bounds = array<i64: 32, 64>}, {pipeline_mode = #tpu.pipeline_mode<synchronous>, transform_indices = @transform_2, window_bounds = array<i64: 1, 64>}, {pipeline_mode = #tpu.pipeline_mode<synchronous>, transform_indices = @transform_3, window_bounds = array<i64: 64, 16>}, {pipeline_mode = #tpu.pipeline_mode<synchronous>, transform_indices = @transform_4, window_bounds = array<i64: 1, 16>}, {transform_indices = @transform_5, window_bounds = array<i64: 8, 128>}]} {
    %c0 = arith.constant 0 : index
    %c0_0 = arith.constant 0 : index
    %0 = vector.load %arg1[%c0, %c0_0] : memref<64x32xf32, #tpu.memory_space<vmem>>, vector<64x32xf32>
    %c0_1 = arith.constant 0 : index
    %c0_2 = arith.constant 0 : index
    %1 = vector.load %arg2[%c0_1, %c0_2] : memref<32x64xf32, #tpu.memory_space<vmem>>, vector<32x64xf32>
    %cst = arith.constant dense<0.000000e+00> : vector<64x64xf32>
    %2 = tpu.matmul %0, %1, %cst {dimension_numbers = #tpu.dot_dimension_numbers<[1], [0], [0], [1], [0, 0, 1, 1], [], []>} : vector<64x32xf32>, vector<32x64xf32>, vector<64x64xf32> -> vector<64x64xf32>
    %c0_3 = arith.constant 0 : index
    %c0_4 = arith.constant 0 : index
    %3 = vector.load %arg3[%c0_3, %c0_4] : memref<1x64xf32, #tpu.memory_space<vmem>>, vector<1x64xf32>
    %4 = vector.broadcast %3 : vector<1x64xf32> to vector<64x64xf32>
    %5 = arith.addf %2, %4 : vector<64x64xf32>
    %cst_5 = arith.constant 0.000000e+00 : f32
    %6 = vector.broadcast %cst_5 : f32 to vector<64x64xf32>
    %7 = arith.maximumf %5, %6 : vector<64x64xf32>
    %c0_6 = arith.constant 0 : index
    %c0_7 = arith.constant 0 : index
    %8 = vector.load %arg4[%c0_6, %c0_7] : memref<64x16xf32, #tpu.memory_space<vmem>>, vector<64x16xf32>
    %cst_8 = arith.constant dense<0.000000e+00> : vector<64x16xf32>
    %9 = tpu.matmul %7, %8, %cst_8 {dimension_numbers = #tpu.dot_dimension_numbers<[1], [0], [0], [1], [0, 0, 1, 1], [], []>} : vector<64x64xf32>, vector<64x16xf32>, vector<64x16xf32> -> vector<64x16xf32>
    %c0_9 = arith.constant 0 : index
    %c0_10 = arith.constant 0 : index
    %10 = vector.load %arg5[%c0_9, %c0_10] : memref<1x16xf32, #tpu.memory_space<vmem>>, vector<1x16xf32>
    %11 = vector.broadcast %10 : vector<1x16xf32> to vector<64x16xf32>
    %12 = arith.addf %9, %11 : vector<64x16xf32>
    %13 = vector.shape_cast %12 : vector<64x16xf32> to vector<8x128xf32>
    %c0_11 = arith.constant 0 : index
    %c0_12 = arith.constant 0 : index
    %14 = vector.load %arg6[%c0_11, %c0_12] : memref<8x128xf32, #tpu.memory_space<vmem>>, vector<8x128xf32>
    tpu.vector_store %arg6[%c0_11, %c0_12], %13 {strides = array<i32>} : memref<8x128xf32, #tpu.memory_space<vmem>>, vector<8x128xf32>,
    return
  }
  func.func @transform_0(%arg0: i32) -> (i32, i32) {
    %c0_i32 = arith.constant 0 : i32
    %c0_i32_0 = arith.constant 0 : i32
    return %arg0, %c0_i32 : i32, i32
  }
  func.func @transform_1(%arg0: i32) -> (i32, i32) {
    %c0_i32 = arith.constant 0 : i32
    %c0_i32_0 = arith.constant 0 : i32
    %c0_i32_1 = arith.constant 0 : i32
    return %c0_i32, %c0_i32_0 : i32, i32
  }
  func.func @transform_2(%arg0: i32) -> (i32, i32) {
    %c0_i32 = arith.constant 0 : i32
    %c0_i32_0 = arith.constant 0 : i32
    %c0_i32_1 = arith.constant 0 : i32
    return %c0_i32, %c0_i32_0 : i32, i32
  }
  func.func @transform_3(%arg0: i32) -> (i32, i32) {
    %c0_i32 = arith.constant 0 : i32
    %c0_i32_0 = arith.constant 0 : i32
    %c0_i32_1 = arith.constant 0 : i32
    return %c0_i32, %c0_i32_0 : i32, i32
  }
  func.func @transform_4(%arg0: i32) -> (i32, i32) {
    %c0_i32 = arith.constant 0 : i32
    %c0_i32_0 = arith.constant 0 : i32
    %c0_i32_1 = arith.constant 0 : i32
    return %c0_i32, %c0_i32_0 : i32, i32
  }
  func.func @transform_5(%arg0: i32) -> (i32, i32) {
    %c0_i32 = arith.constant 0 : i32
    %c0_i32_0 = arith.constant 0 : i32
    return %arg0, %c0_i32 : i32, i32
  }
}

module attributes {stable_mosaic.version = 11 : i64} {
  func.func @supertree_kernel(%arg0: i32, %arg1: memref<64x32xf32, #tpu.memory_space<vmem>>, %arg2: memref<32x64xf32, #tpu.memory_space<vmem>>, %arg3: memref<1x64xf32, #tpu.memory_space<vmem>>, %arg4: memref<64x16xf32, #tpu.memory_space<vmem>>, %arg5: memref<1x16xf32, #tpu.memory_space<vmem>>, %arg6: memref<64x16xf32, #tpu.memory_space<vmem>>) attributes {dimension_semantics = [#tpu.dimension_semantics<parallel>], iteration_bounds = array<i64: 1>, scalar_prefetch = 0 : i64, scratch_operands = 0 : i64, tpu.core_type = #tpu.core_type<tc>, window_params = [{transform_indices = @transform_0, window_bounds = array<i64: 64, 32>}, {pipeline_mode = #tpu.pipeline_mode<synchronous>, transform_indices = @transform_1, window_bounds = array<i64: 32, 64>}, {pipeline_mode = #tpu.pipeline_mode<synchronous>, transform_indices = @transform_2, window_bounds = array<i64: 1, 64>}, {pipeline_mode = #tpu.pipeline_mode<synchronous>, transform_indices = @transform_3, window_bounds = array<i64: 64, 16>}, {pipeline_mode = #tpu.pipeline_mode<synchronous>, transform_indices = @transform_4, window_bounds = array<i64: 1, 16>}, {transform_indices = @transform_5, window_bounds = array<i64: 64, 16>}]} {
    %c0 = arith.constant 0 : index
    %c0_0 = arith.constant 0 : index
    %0 = vector.load %arg1[%c0, %c0_0] : memref<64x32xf32, #tpu.memory_space<vmem>>, vector<64x32xf32>
    %c0_1 = arith.constant 0 : index
    %c0_2 = arith.constant 0 : index
    %1 = vector.load %arg2[%c0_1, %c0_2] : memref<32x64xf32, #tpu.memory_space<vmem>>, vector<32x64xf32>
    %cst = arith.constant dense<0.000000e+00> : vector<64x64xf32>
    %2 = tpu.matmul %0, %1, %cst {dimension_numbers = #tpu.dot_dimension_numbers<[1], [0], [0], [1], [0, 0, 1, 1], [], []>} : vector<64x32xf32>, vector<32x64xf32>, vector<64x64xf32> -> vector<64x64xf32>
    %c0_3 = arith.constant 0 : index
    %c0_4 = arith.constant 0 : index
    %3 = vector.load %arg3[%c0_3, %c0_4] : memref<1x64xf32, #tpu.memory_space<vmem>>, vector<1x64xf32>
    %4 = vector.broadcast %3 : vector<1x64xf32> to vector<64x64xf32>
    %5 = arith.addf %2, %4 : vector<64x64xf32>
    %cst_5 = arith.constant 0.000000e+00 : f32
    %6 = vector.broadcast %cst_5 : f32 to vector<64x64xf32>
    %7 = arith.maximumf %5, %6 : vector<64x64xf32>
    %c0_6 = arith.constant 0 : index
    %c0_7 = arith.constant 0 : index
    %8 = vector.load %arg4[%c0_6, %c0_7] : memref<64x16xf32, #tpu.memory_space<vmem>>, vector<64x16xf32>
    %cst_8 = arith.constant dense<0.000000e+00> : vector<64x16xf32>
    %9 = tpu.matmul %7, %8, %cst_8 {dimension_numbers = #tpu.dot_dimension_numbers<[1], [0], [0], [1], [0, 0, 1, 1], [], []>} : vector<64x64xf32>, vector<64x16xf32>, vector<64x16xf32> -> vector<64x16xf32>
    %c0_9 = arith.constant 0 : index
    %c0_10 = arith.constant 0 : index
    %10 = vector.load %arg5[%c0_9, %c0_10] : memref<1x16xf32, #tpu.memory_space<vmem>>, vector<1x16xf32>
    %11 = vector.broadcast %10 : vector<1x16xf32> to vector<64x16xf32>
    %12 = arith.addf %9, %11 : vector<64x16xf32>
    %c0_11 = arith.constant 0 : index
    %c0_12 = arith.constant 0 : index
    %13 = vector.load %arg6[%c0_11, %c0_12] : memref<64x16xf32, #tpu.memory_space<vmem>>, vector<64x16xf32>
    tpu.vector_store %arg6[%c0_11, %c0_12], %12 {strides = array<i32>} : memref<64x16xf32, #tpu.memory_space<vmem>>, vector<64x16xf32>,
    return
  }
  func.func @transform_0(%arg0: i32) -> (i32, i32) {
    %c0_i32 = arith.constant 0 : i32
    %c0_i32_0 = arith.constant 0 : i32
    return %arg0, %c0_i32 : i32, i32
  }
  func.func @transform_1(%arg0: i32) -> (i32, i32) {
    %c0_i32 = arith.constant 0 : i32
    %c0_i32_0 = arith.constant 0 : i32
    %c0_i32_1 = arith.constant 0 : i32
    return %c0_i32, %c0_i32_0 : i32, i32
  }
  func.func @transform_2(%arg0: i32) -> (i32, i32) {
    %c0_i32 = arith.constant 0 : i32
    %c0_i32_0 = arith.constant 0 : i32
    %c0_i32_1 = arith.constant 0 : i32
    return %c0_i32, %c0_i32_0 : i32, i32
  }
  func.func @transform_3(%arg0: i32) -> (i32, i32) {
    %c0_i32 = arith.constant 0 : i32
    %c0_i32_0 = arith.constant 0 : i32
    %c0_i32_1 = arith.constant 0 : i32
    return %c0_i32, %c0_i32_0 : i32, i32
  }
  func.func @transform_4(%arg0: i32) -> (i32, i32) {
    %c0_i32 = arith.constant 0 : i32
    %c0_i32_0 = arith.constant 0 : i32
    %c0_i32_1 = arith.constant 0 : i32
    return %c0_i32, %c0_i32_0 : i32, i32
  }
  func.func @transform_5(%arg0: i32) -> (i32, i32) {
    %c0_i32 = arith.constant 0 : i32
    %c0_i32_0 = arith.constant 0 : i32
    return %arg0, %c0_i32 : i32, i32
  }
}

</mosaic_0001>

<llo_original>
// kernel: tpu_custom_call.1
$region0: #{tpu_custom_call.1}
  #allocation0 [shape = 'u32[]', space=smem, size = 0x4, offset = 0x4, fixed_abs, tag = 'smem constant byte address 0x4 - core index']
  #allocation1 [shape = 'u32[144,128]{1,0:T(1,128)}', space=vmem, size = 0x12000, scoped, tag = 'internal scratch']
  %s0 = inlined_call_operand.vmem [shape: f32[16,32], index: 0, kind: input, shape index: {}]
  %s1 = inlined_call_operand.vmem [shape: f32[32,64], index: 1, kind: input, shape index: {}]
  %s2 = inlined_call_operand.vmem [shape: f32[1,64], index: 2, kind: input, shape index: {}]
  %s3 = inlined_call_operand.vmem [shape: f32[64,16], index: 3, kind: input, shape index: {}]
  %s4 = inlined_call_operand.vmem [shape: f32[1,16], index: 4, kind: input, shape index: {}]
  %s5 = inlined_call_operand.vmem [shape: f32[64,16], index: 5, kind: output, shape index: {}]
  %s6 = sld [smem:[#allocation0]]
  $region30: #{tpu_custom_call.1} parent=0
    _
  %s8 = ssub.s32 1, %s6
  %s9 = scalar_select 0, %s8, %s6
  // Predicated region
  $region2: #{tpu_custom_call.1} parent=0 // pred_check
    _
  $region3: #{tpu_custom_call.1} parent=0 // pred_check_branch
    %11 = sbr.rel (0) target = $region5
  $region4: #{tpu_custom_call.1} parent=0 // pred_region
    _
  $region5: #{tpu_custom_call.1} parent=0 // pred_fallthru
    _
  // Predicated region
  $region6: #{tpu_custom_call.1} parent=0 // pred_check
    _
  $region7: #{tpu_custom_call.1} parent=0 // pred_check_branch
    %13 = sbr.rel (0) target = $region9
  $region8: #{tpu_custom_call.1} parent=0 // pred_region
    _
  $region9: #{tpu_custom_call.1} parent=0 // pred_fallthru
    _
  // Predicated region
  $region10: #{tpu_custom_call.1} parent=0 // pred_check
    _
  $region11: #{tpu_custom_call.1} parent=0 // pred_check_branch
    %15 = sbr.rel (0) target = $region13
  $region12: #{tpu_custom_call.1} parent=0 // pred_region
    _
  $region13: #{tpu_custom_call.1} parent=0 // pred_fallthru
    _
  // Predicated region
  $region14: #{tpu_custom_call.1} parent=0 // pred_check
    _
  $region15: #{tpu_custom_call.1} parent=0 // pred_check_branch
    %17 = sbr.rel (0) target = $region17
  $region16: #{tpu_custom_call.1} parent=0 // pred_region
    _
  $region17: #{tpu_custom_call.1} parent=0 // pred_fallthru
    _
  // Predicated region
  $region18: #{tpu_custom_call.1} parent=0 // pred_check
    _
  $region19: #{tpu_custom_call.1} parent=0 // pred_check_branch
    %19 = sbr.rel (0) target = $region21
  $region20: #{tpu_custom_call.1} parent=0 // pred_region
    _
  $region21: #{tpu_custom_call.1} parent=0 // pred_fallthru
    _
  %v20 = vld [vmem:[%s0] sm:$0xff]
  %v21 = vld [vmem:[%s0 + $0x8] sm:$0xff]
  %v22 = vld [vmem:[%s0 + $0x10] sm:$0xff]
  %v23 = vld [vmem:[%s0 + $0x18] sm:$0xff]
  %v24 = vld [vmem:[%s0 + $0x20] sm:$0xff]
  %v25 = vld [vmem:[%s0 + $0x28] sm:$0xff]
  %v26 = vld [vmem:[%s0 + $0x30] sm:$0xff]
  %v27 = vld [vmem:[%s0 + $0x38] sm:$0xff]
  %v28 = vld [vmem:[%s1] sm:$0xff]
  %v29 = vld [vmem:[%s1 + $0x8] sm:$0xff]
  %v30 = vld [vmem:[%s1 + $0x10] sm:$0xff]
  %v31 = vld [vmem:[%s1 + $0x18] sm:$0xff]
  %v32 = vld [vmem:[%s2] sm:$0x1]
  %v34 = vlaneseq
  %v35 = vshrl.u32 %v34, 7
  %v36 = vsub.s32 0, %v35
  %v37 = vrot.slane %v32, %v36
  %vm39 = vcmask 261120
  %v41 = vsel %vm39, %v20, 0
  %v44 = vsel %vm39, %v21, 0
  %v47 = vsel %vm39, %v22, 0
  %v50 = vsel %vm39, %v23, 0
  %v53 = vsel %vm39, %v24, 0
  %v56 = vsel %vm39, %v25, 0
  %v59 = vsel %vm39, %v26, 0
  %v62 = vsel %vm39, %v27, 0
  %64 = vmatprep.subr.mxu0 0.0
  %65 = vmatpush1.msra.mxu0 %v28
  %66 = vmatprep.subr.mxu0 0.0
  %67 = vmatpush1.msra.mxu0 %v29
  %68 = vmatprep.subr.mxu0 0.0
  %69 = vmatpush1.msra.mxu0 %v30
  %70 = vmatprep.subr.mxu0 0.0
  %71 = vmatpush1.msra.mxu0 %v31
  %72 = vmatprep.subr.mxu0 0.0
  %73 = vmatpush1.msra.mxu0 0.0
  %74 = vmatprep.subr.mxu0 0.0
  %75 = vmatpush1.msra.mxu0 0.0
  %76 = vmatprep.subr.mxu0 0.0
  %77 = vmatpush1.msra.mxu0 0.0
  %78 = vmatprep.subr.mxu0 0.0
  %79 = vmatpush1.msra.mxu0 0.0
  %80 = vmatprep.subr.mxu0 0.0
  %81 = vmatpush1.msra.mxu0 0.0
  %82 = vmatprep.subr.mxu0 0.0
  %83 = vmatpush1.msra.mxu0 0.0
  %84 = vmatprep.subr.mxu0 0.0
  %85 = vmatpush1.msra.mxu0 0.0
  %86 = vmatprep.subr.mxu0 0.0
  %87 = vmatpush1.msra.mxu0 0.0
  %88 = vmatprep.subr.mxu0 0.0
  %89 = vmatpush1.msra.mxu0 0.0
  %90 = vmatprep.subr.mxu0 0.0
  %91 = vmatpush1.msra.mxu0 0.0
  %92 = vmatprep.subr.mxu0 0.0
  %93 = vmatpush1.msra.mxu0 0.0
  %94 = vmatprep.subr.mxu0 0.0
  %95 = vmatpush1.msra.mxu0 0.0
  %96 = vmatprep.subr.mxu0 0.0
  %97 = vmatpush1.msra.mxu0 0.0
  %98 = vmatprep.subr.mxu0 0.0
  %99 = vmatpush1.msra.mxu0 0.0
  %100 = vmatprep.subr.mxu0 0.0
  %101 = vmatpush1.msra.mxu0 0.0
  %102 = vmatprep.subr.mxu0 0.0
  %103 = vmatpush1.msra.mxu0 0.0
  %104 = vmatprep.subr.mxu0 0.0
  %105 = vmatpush1.msra.mxu0 0.0
  %106 = vmatprep.subr.mxu0 0.0
  %107 = vmatpush1.msra.mxu0 0.0
  %108 = vmatprep.subr.mxu0 0.0
  %109 = vmatpush1.msra.mxu0 0.0
  %110 = vmatprep.subr.mxu0 0.0
  %111 = vmatpush1.msra.mxu0 0.0
  %112 = vmatprep.subr.mxu0 0.0
  %113 = vmatpush1.msra.mxu0 0.0
  %114 = vmatprep.subr.mxu0 0.0
  %115 = vmatpush1.msra.mxu0 0.0
  %116 = vmatprep.subr.mxu0 0.0
  %117 = vmatpush1.msra.mxu0 0.0
  %118 = vmatprep.subr.mxu0 0.0
  %119 = vmatpush1.msra.mxu0 0.0
  %120 = vmatprep.subr.mxu0 0.0
  %121 = vmatpush1.msra.mxu0 0.0
  %122 = vmatprep.subr.mxu0 0.0
  %123 = vmatpush1.msra.mxu0 0.0
  %124 = vmatprep.subr.mxu0 0.0
  %125 = vmatpush1.msra.mxu0 0.0
  %126 = vmatprep.subr.mxu0 0.0
  %127 = vmatpush1.msra.mxu0 0.0
  %128 = vmatprep.mubr.f32.mxu0 0.0
  %129 = vmatmul.mubr.f32.gmra.mrb[0].mxu0 %v41
  %v130 = vpop.f32.mrb[0].mxu0
  %v131 = vadd.f32 %v37, %v130
  %v132 = vpop.f32.mrb[0].mxu0
  %133 = vmatprep.mubr.f32.mxu0 0.0
  %134 = vmatmul.mubr.f32.gmra.mrb[0].mxu0 %v44
  %v135 = vpop.f32.mrb[0].mxu0
  %v136 = vadd.f32 %v37, %v135
  %v137 = vpop.f32.mrb[0].mxu0
  %138 = vmatprep.mubr.f32.mxu0 0.0
  %139 = vmatmul.mubr.f32.gmra.mrb[0].mxu0 %v47
  %v140 = vpop.f32.mrb[0].mxu0
  %v141 = vadd.f32 %v37, %v140
  %v142 = vpop.f32.mrb[0].mxu0
  %143 = vmatprep.mubr.f32.mxu0 0.0
  %144 = vmatmul.mubr.f32.gmra.mrb[0].mxu0 %v50
  %v145 = vpop.f32.mrb[0].mxu0
  %v146 = vadd.f32 %v37, %v145
  %v147 = vpop.f32.mrb[0].mxu0
  %148 = vmatprep.mubr.f32.mxu0 0.0
  %149 = vmatmul.mubr.f32.gmra.mrb[0].mxu0 %v53
  %v150 = vpop.f32.mrb[0].mxu0
  %v151 = vadd.f32 %v37, %v150
  %v152 = vpop.f32.mrb[0].mxu0
  %153 = vmatprep.mubr.f32.mxu0 0.0
  %154 = vmatmul.mubr.f32.gmra.mrb[0].mxu0 %v56
  %v155 = vpop.f32.mrb[0].mxu0
  %v156 = vadd.f32 %v37, %v155
  %v157 = vpop.f32.mrb[0].mxu0
  %158 = vmatprep.mubr.f32.mxu0 0.0
  %159 = vmatmul.mubr.f32.gmra.mrb[0].mxu0 %v59
  %v160 = vpop.f32.mrb[0].mxu0
  %v161 = vadd.f32 %v37, %v160
  %v162 = vpop.f32.mrb[0].mxu0
  %163 = vmatprep.mubr.f32.mxu0 0.0
  %164 = vmatmul.mubr.f32.gmra.mrb[0].mxu0 %v62
  %v165 = vpop.f32.mrb[0].mxu0
  %v166 = vadd.f32 %v37, %v165
  %v167 = vpop.f32.mrb[0].mxu0
  %168 = vdwg.mxu0
  %v169 = vmax.f32 %v131, 0.0
  %v170 = vmax.f32 %v136, 0.0
  %v171 = vmax.f32 %v141, 0.0
  %v172 = vmax.f32 %v146, 0.0
  %v173 = vmax.f32 %v151, 0.0
  %v174 = vmax.f32 %v156, 0.0
  %v175 = vmax.f32 %v161, 0.0
  %v176 = vmax.f32 %v166, 0.0
  %v177 = vld [vmem:[%s3] sm:$0xff]
  %v178 = vld [vmem:[%s3 + $0x8] sm:$0xff]
  %v179 = vld [vmem:[%s3 + $0x10] sm:$0xff]
  %v180 = vld [vmem:[%s3 + $0x18] sm:$0xff]
  %v181 = vld [vmem:[%s3 + $0x20] sm:$0xff]
  %v182 = vld [vmem:[%s3 + $0x28] sm:$0xff]
  %v183 = vld [vmem:[%s3 + $0x30] sm:$0xff]
  %v184 = vld [vmem:[%s3 + $0x38] sm:$0xff]
  %v185 = vld [vmem:[%s4] sm:$0x1]
  %v187 = vlaneseq
  %v188 = vshrl.u32 %v187, 7
  %v189 = vsub.s32 0, %v188
  %v190 = vrot.slane %v185, %v189
  %vm192 = vcmask 523264
  %v194 = vsel %vm192, %v169, 0
  %v197 = vsel %vm192, %v170, 0
  %v200 = vsel %vm192, %v171, 0
  %v203 = vsel %vm192, %v172, 0
  %v206 = vsel %vm192, %v173, 0
  %v209 = vsel %vm192, %v174, 0
  %v212 = vsel %vm192, %v175, 0
  %v215 = vsel %vm192, %v176, 0
  %217 = vmatprep.subr.mxu0 0.0
  %218 = vmatpush1.msra.mxu0 %v177
  %219 = vmatprep.subr.mxu0 0.0
  %220 = vmatpush1.msra.mxu0 %v178
  %221 = vmatprep.subr.mxu0 0.0
  %222 = vmatpush1.msra.mxu0 %v179
  %223 = vmatprep.subr.mxu0 0.0
  %224 = vmatpush1.msra.mxu0 %v180
  %225 = vmatprep.subr.mxu0 0.0
  %226 = vmatpush1.msra.mxu0 %v181
  %227 = vmatprep.subr.mxu0 0.0
  %228 = vmatpush1.msra.mxu0 %v182
  %229 = vmatprep.subr.mxu0 0.0
  %230 = vmatpush1.msra.mxu0 %v183
  %231 = vmatprep.subr.mxu0 0.0
  %232 = vmatpush1.msra.mxu0 %v184
  %233 = vmatprep.subr.mxu0 0.0
  %234 = vmatpush1.msra.mxu0 0.0
  %235 = vmatprep.subr.mxu0 0.0
  %236 = vmatpush1.msra.mxu0 0.0
  %237 = vmatprep.subr.mxu0 0.0
  %238 = vmatpush1.msra.mxu0 0.0
  %239 = vmatprep.subr.mxu0 0.0
  %240 = vmatpush1.msra.mxu0 0.0
  %241 = vmatprep.subr.mxu0 0.0
  %242 = vmatpush1.msra.mxu0 0.0
  %243 = vmatprep.subr.mxu0 0.0
  %244 = vmatpush1.msra.mxu0 0.0
  %245 = vmatprep.subr.mxu0 0.0
  %246 = vmatpush1.msra.mxu0 0.0
  %247 = vmatprep.subr.mxu0 0.0
  %248 = vmatpush1.msra.mxu0 0.0
  %249 = vmatprep.subr.mxu0 0.0
  %250 = vmatpush1.msra.mxu0 0.0
  %251 = vmatprep.subr.mxu0 0.0
  %252 = vmatpush1.msra.mxu0 0.0
  %253 = vmatprep.subr.mxu0 0.0
  %254 = vmatpush1.msra.mxu0 0.0
  %255 = vmatprep.subr.mxu0 0.0
  %256 = vmatpush1.msra.mxu0 0.0
  %257 = vmatprep.subr.mxu0 0.0
  %258 = vmatpush1.msra.mxu0 0.0
  %259 = vmatprep.subr.mxu0 0.0
  %260 = vmatpush1.msra.mxu0 0.0
  %261 = vmatprep.subr.mxu0 0.0
  %262 = vmatpush1.msra.mxu0 0.0
  %263 = vmatprep.subr.mxu0 0.0
  %264 = vmatpush1.msra.mxu0 0.0
  %265 = vmatprep.subr.mxu0 0.0
  %266 = vmatpush1.msra.mxu0 0.0
  %267 = vmatprep.subr.mxu0 0.0
  %268 = vmatpush1.msra.mxu0 0.0
  %269 = vmatprep.subr.mxu0 0.0
  %270 = vmatpush1.msra.mxu0 0.0
  %271 = vmatprep.subr.mxu0 0.0
  %272 = vmatpush1.msra.mxu0 0.0
  %273 = vmatprep.subr.mxu0 0.0
  %274 = vmatpush1.msra.mxu0 0.0
  %275 = vmatprep.subr.mxu0 0.0
  %276 = vmatpush1.msra.mxu0 0.0
  %277 = vmatprep.subr.mxu0 0.0
  %278 = vmatpush1.msra.mxu0 0.0
  %279 = vmatprep.subr.mxu0 0.0
  %280 = vmatpush1.msra.mxu0 0.0
  %281 = vmatprep.mubr.f32.mxu0 0.0
  %282 = vmatmul.mubr.f32.gmra.mrb[0].mxu0 %v194
  %v283 = vpop.f32.mrb[0].mxu0
  %v284 = vadd.f32 %v190, %v283
  %v285 = vpop.f32.mrb[0].mxu0
  %286 = vmatprep.mubr.f32.mxu0 0.0
  %287 = vmatmul.mubr.f32.gmra.mrb[0].mxu0 %v197
  %v288 = vpop.f32.mrb[0].mxu0
  %v289 = vadd.f32 %v190, %v288
  %v290 = vpop.f32.mrb[0].mxu0
  %291 = vmatprep.mubr.f32.mxu0 0.0
  %292 = vmatmul.mubr.f32.gmra.mrb[0].mxu0 %v200
  %v293 = vpop.f32.mrb[0].mxu0
  %v294 = vadd.f32 %v190, %v293
  %v295 = vpop.f32.mrb[0].mxu0
  %296 = vmatprep.mubr.f32.mxu0 0.0
  %297 = vmatmul.mubr.f32.gmra.mrb[0].mxu0 %v203
  %v298 = vpop.f32.mrb[0].mxu0
  %v299 = vadd.f32 %v190, %v298
  %v300 = vpop.f32.mrb[0].mxu0
  %301 = vmatprep.mubr.f32.mxu0 0.0
  %302 = vmatmul.mubr.f32.gmra.mrb[0].mxu0 %v206
  %v303 = vpop.f32.mrb[0].mxu0
  %v304 = vadd.f32 %v190, %v303
  %v305 = vpop.f32.mrb[0].mxu0
  %306 = vmatprep.mubr.f32.mxu0 0.0
  %307 = vmatmul.mubr.f32.gmra.mrb[0].mxu0 %v209
  %v308 = vpop.f32.mrb[0].mxu0
  %v309 = vadd.f32 %v190, %v308
  %v310 = vpop.f32.mrb[0].mxu0
  %311 = vmatprep.mubr.f32.mxu0 0.0
  %312 = vmatmul.mubr.f32.gmra.mrb[0].mxu0 %v212
  %v313 = vpop.f32.mrb[0].mxu0
  %v314 = vadd.f32 %v190, %v313
  %v315 = vpop.f32.mrb[0].mxu0
  %316 = vmatprep.mubr.f32.mxu0 0.0
  %317 = vmatmul.mubr.f32.gmra.mrb[0].mxu0 %v215
  %v318 = vpop.f32.mrb[0].mxu0
  %v319 = vadd.f32 %v190, %v318
  %v320 = vpop.f32.mrb[0].mxu0
  %321 = vdwg.mxu0
  %vm322 = vcmask 130048
  %323 = vst.msk [vmem:[%s5] sm:$0xff] %vm322, %v284
  %324 = vst.msk [vmem:[%s5 + $0x8] sm:$0xff] %vm322, %v289
  %325 = vst.msk [vmem:[%s5 + $0x10] sm:$0xff] %vm322, %v294
  %326 = vst.msk [vmem:[%s5 + $0x18] sm:$0xff] %vm322, %v299
  %327 = vst.msk [vmem:[%s5 + $0x20] sm:$0xff] %vm322, %v304
  %328 = vst.msk [vmem:[%s5 + $0x28] sm:$0xff] %vm322, %v309
  %329 = vst.msk [vmem:[%s5 + $0x30] sm:$0xff] %vm322, %v314
  %330 = vst.msk [vmem:[%s5 + $0x38] sm:$0xff] %vm322, %v319
  // Predicated region
  $region22: #{tpu_custom_call.1} parent=0 // pred_check
    _
  $region23: #{tpu_custom_call.1} parent=0 // pred_check_branch
    %332 = sbr.rel (0) target = $region25
  $region24: #{tpu_custom_call.1} parent=0 // pred_region
    _
  $region25: #{tpu_custom_call.1} parent=0 // pred_fallthru
    _
  // Predicated region
  $region26: #{tpu_custom_call.1} parent=0 // pred_check
    _
  $region27: #{tpu_custom_call.1} parent=0 // pred_check_branch
    %334 = sbr.rel (0) target = $region29
  $region28: #{tpu_custom_call.1} parent=0 // pred_region
    _
  $region29: #{tpu_custom_call.1} parent=0 // pred_fallthru
    _

</llo_original>
